<compile_context>
chip_gen: v6e
topology: v6e:2x2x1
jax: 0.10.0
libtpu: 0.0.40
codegen_flags: <defaults>
</compile_context>

<pallas_src>
import functools

import jax
import jax.numpy as jnp
from jax.experimental import pallas as pl
from jax.experimental.pallas import tpu as pltpu


def _round_up(x, m):
    return (x + m - 1) // m * m


def _cdiv(a, b):
    return (a + b - 1) // b


def _tpu_hw_info():
    """Best-effort (vmem_capacity_bytes, num_tensorcores); conservative default."""
    vmem = 64 * 1024 * 1024   # assume v7x-sized VMEM if the query fails
    cores = 1
    try:
        info = pltpu.get_tpu_info()
        v = getattr(info, "vmem_capacity_bytes", None)
        if v:
            vmem = int(v)
        for name in ("num_tensorcores", "tensorcore_count", "num_cores",
                     "cores_per_chip"):
            c = getattr(info, name, None)
            if c:
                cores = int(c)
                break
    except Exception:
        pass
    return vmem, cores


def _attn_kernel(w_ref, la_ref, ga_ref, c_ref, gout_ref,
                 m_sc, l_sc, acc_sc, *,
                 normalize_attn, s_true, s_tile, use_mxu):
    st = pl.program_id(1)
    last = pl.num_programs(1) - 1
    nb = la_ref.shape[0]

    # Validity mask for the ragged last spatial tile.  The grid is
    # cdiv(S, s_tile) over the UNPADDED arrays, so the trailing lanes of the
    # last input block hold stale-VMEM garbage (possibly NaN/inf) that must
    # never reach the accumulators.  Statically elided when s_tile | S.
    has_pad = (s_true % s_tile) != 0
    if has_pad:
        pos = st * s_tile + jax.lax.broadcasted_iota(jnp.int32, (nb, s_tile), 1)
        valid = pos < s_true                                  # (Nb, TS)
    else:
        valid = None

    if use_mxu:
        # Feed blocks to the MXU in their NATIVE dtype (bf16 in / f32 acc).
        # c = w.la + w.ga avoids materializing an (Nb, C, TS) x = la + ga temp.
        la = la_ref[...]                                      # (Nb, C, TS)
        ga = ga_ref[...]
        w = w_ref[...]                                        # (1, C)
        wb = jnp.broadcast_to(w[None], (nb, 1, w.shape[1]))   # tiny
        c_tile = (
            jnp.einsum("nkc,ncs->nks", wb, la,
                       preferred_element_type=jnp.float32)
            + jnp.einsum("nkc,ncs->nks", wb, ga,
                         preferred_element_type=jnp.float32)
        )[:, 0, :]                                            # (Nb, TS) f32
        la_pool = la if valid is None else jnp.where(valid[:, None, :], la, 0)
    else:
        # Small-C path (C <= 64): VPU broadcast-multiply + sublane reduction;
        # the f32 upcast is cheap at this size.
        la32 = la_ref[...].astype(jnp.float32)
        x = la32 + ga_ref[...].astype(jnp.float32)
        w = w_ref[...].astype(jnp.float32)                    # (C, 1)
        c_tile = jnp.sum(x * w[None], axis=1)                 # (Nb, TS)
        la_pool = la32 if valid is None else jnp.where(
            valid[:, None, :], la32, 0.0)

    # c is the PRE-softmax 1x1x1-conv output.  Lane-dense store; Pallas drops
    # the out-of-range columns of the ragged last block.
    c_ref[...] = c_tile[:, None, :].astype(c_ref.dtype)

    def _pool(weights):
        """sum_s weights[n, s] * la[n, c, s]  -> (Nb, C), f32 accumulation."""
        if use_mxu:
            return jnp.einsum(
                "nks,ncs->nkc",
                weights.astype(la_pool.dtype)[:, None, :], la_pool,
                preferred_element_type=jnp.float32)[:, 0, :]
        return jnp.sum(la_pool * weights[:, None, :], axis=-1)

    if normalize_attn:
        # Flash-style online softmax over the full spatial extent.
        @pl.when(st == 0)
        def _():
            m_sc[...] = jnp.full_like(m_sc, -jnp.inf)
            l_sc[...] = jnp.zeros_like(l_sc)
            acc_sc[...] = jnp.zeros_like(acc_sc)

        c_m = c_tile if valid is None else jnp.where(valid, c_tile, -jnp.inf)
        m_old = m_sc[...]                                               # (Nb,1)
        m_new = jnp.maximum(m_old, jnp.max(c_m, axis=-1, keepdims=True))
        alpha = jnp.exp(m_old - m_new)
        p = jnp.exp(c_m - m_new)                                        # pad->0
        l_sc[...] = alpha * l_sc[...] + jnp.sum(p, axis=-1, keepdims=True)
        acc_sc[...] = alpha * acc_sc[...] + _pool(p)
        m_sc[...] = m_new

        @pl.when(st == last)
        def _():
            l = l_sc[...]
            inv = pl.reciprocal(l, approx=True)       # EUP slot is free
            inv = inv * (2.0 - l * inv)               # one Newton refinement
            gout_ref[...] = (acc_sc[...] * inv)[:, None, :].astype(
                gout_ref.dtype)
    else:
        @pl.when(st == 0)
        def _():
            acc_sc[...] = jnp.zeros_like(acc_sc)

        a = jax.nn.sigmoid(c_tile)                                      # (Nb,TS)
        if valid is not None:
            a = jnp.where(valid, a, 0.0)
        acc_sc[...] = acc_sc[...] + _pool(a)

        @pl.when(st == last)
        def _():
            # adaptive_avg_pool3d((1,1,1)) == mean over the TRUE (unpadded) S.
            gout_ref[...] = (acc_sc[...] * jnp.float32(1.0 / s_true)
                             )[:, None, :].astype(gout_ref.dtype)


def _in_spec(block_shape, index_map, buffer_count):
    """Input BlockSpec, with deeper pipelining when requested & supported."""
    if buffer_count > 2 and hasattr(pl, "Buffered"):
        try:
            return pl.BlockSpec(block_shape, index_map,
                                pipeline_mode=pl.Buffered(buffer_count))
        except TypeError:
            pass
    return pl.BlockSpec(block_shape, index_map)


def linear_attention_block_3d(la, ga, weight, normalize_attn=True, *,
                              s_tile=None, batch_tile=None,
                              buffer_count=None, vmem_limit_bytes=None):
    """Pallas TPU forward of LinearAttentionBlock3D.

    la, ga : (N, C, T, W, H), same shape/dtype (f32 or bf16).
    weight : (1, C, 1, 1, 1) Conv3d(C, 1, kernel_size=1, bias=False) weight.
    Returns (c, ga_out) with c: (N, 1, T, W, H) pre-softmax map, ga_out: (N, C).
    """
    N, C, T, W, H = la.shape
    assert ga.shape == la.shape, "la and ga must have the same shape"
    S = T * W * H
    out_dtype = la.dtype
    itemsize = jnp.dtype(la.dtype).itemsize

    vmem_cap, n_cores = _tpu_hw_info()
    big_vmem = vmem_cap >= 100 * 1024 * 1024   # v5e/v6e: 128 MiB; v7x: 64 MiB

    # Pipeline depth: 3-deep on 128-MiB parts, 2-deep on v7x (spend VMEM on
    # tile width instead of pipeline depth there).
    if buffer_count is None:
        buffer_count = 3 if big_vmem else 2
    # Input-buffer VMEM budget: 2 inputs x buffer_count x block.
    budget = (72 if big_vmem else 36) * 1024 * 1024

    # ---- batch tile ---------------------------------------------------------
    divisors = [d for d in (8, 4, 2, 1) if N % d == 0]
    if n_cores >= 2 and N >= 2:
        # Keep >= 2 steps on the "parallel" axis so both v7x TensorCores work.
        multi = [d for d in divisors if N // d >= 2]
        if multi:
            divisors = multi
    if batch_tile is not None:
        assert N % batch_tile == 0
        divisors = [batch_tile]

    s_cap = _round_up(S, 128)

    # ---- spatial tile: >= 512 lanes preferred; shrink nb before the tile ----
    if s_tile is None:
        nb, s_tile = divisors[0], 0
        for d in divisors:
            ts = budget // (2 * buffer_count * d * C * itemsize)
            ts = max(128, min((ts // 128) * 128, s_cap))
            if ts >= min(512, s_cap):
                nb, s_tile = d, ts
                break
            if ts > s_tile:
                nb, s_tile = d, ts
    else:
        nb = divisors[0]
    assert s_tile % 128 == 0, "s_tile must be a multiple of 128 (lane width)"

    n_s_tiles = _cdiv(S, s_tile)
    buffer_count = max(2, min(buffer_count, n_s_tiles))

    block_bytes = nb * C * s_tile * itemsize
    if vmem_limit_bytes is None:
        # Input buffers + headroom for compiler temporaries / outputs / scratch.
        vmem_limit_bytes = (2 * buffer_count * block_bytes
                            + 3 * block_bytes + (8 << 20))
        vmem_limit_bytes = max(32 << 20,
                               min(vmem_limit_bytes, int(vmem_cap * 0.85)))

    # No HBM padding: the grid runs over the unpadded (N, C, S) views and the
    # ragged last tile is masked inside the kernel.
    la_f = la.reshape(N, C, S)
    ga_f = ga.reshape(N, C, S)

    use_mxu = C > 64
    if use_mxu:
        w_in = weight.reshape(1, C)
        w_spec = pl.BlockSpec((1, C), lambda n, s: (0, 0))
    else:
        w_in = weight.reshape(C, 1)
        w_spec = pl.BlockSpec((C, 1), lambda n, s: (0, 0))

    kernel = functools.partial(
        _attn_kernel, normalize_attn=normalize_attn,
        s_true=S, s_tile=s_tile, use_mxu=use_mxu)

    c_flat, ga_out = pl.pallas_call(
        kernel,
        out_shape=(
            jax.ShapeDtypeStruct((N, 1, S), out_dtype),
            jax.ShapeDtypeStruct((N, 1, C), out_dtype),
        ),
        grid_spec=pltpu.PrefetchScalarGridSpec(
            num_scalar_prefetch=0,
            grid=(N // nb, n_s_tiles),
            in_specs=[
                w_spec,
                _in_spec((nb, C, s_tile), lambda n, s: (n, 0, s), buffer_count),
                _in_spec((nb, C, s_tile), lambda n, s: (n, 0, s), buffer_count),
            ],
            out_specs=(
                pl.BlockSpec((nb, 1, s_tile), lambda n, s: (n, 0, s)),  # c
                pl.BlockSpec((nb, 1, C), lambda n, s: (n, 0, 0)),       # ga_out
            ),
            scratch_shapes=[
                pltpu.VMEM((nb, 1), jnp.float32),   # running max
                pltpu.VMEM((nb, 1), jnp.float32),   # running softmax denominator
                pltpu.VMEM((nb, C), jnp.float32),   # ga accumulator
            ],
        ),
        compiler_params=pltpu.CompilerParams(
            dimension_semantics=("parallel", "arbitrary"),
            vmem_limit_bytes=int(vmem_limit_bytes),
        ),
    )(w_in, la_f, ga_f)

    c = c_flat.reshape(N, 1, T, W, H)
    return c, ga_out.reshape(N, C)


def _reference(la, ga, weight, normalize_attn):
    """Pure-JAX reference of the (intended) forward pass, all f32."""
    N, C, T, W, H = la.shape
    w = weight.reshape(1, C, 1, 1, 1).astype(jnp.float32)
    x = la.astype(jnp.float32) + ga.astype(jnp.float32)
    c = jnp.sum(w * x, axis=1, keepdims=True)                 # (N,1,T,W,H)
    la32 = la.astype(jnp.float32)
    if normalize_attn:
        a = jax.nn.softmax(c.reshape(N, -1), axis=-1).reshape(N, 1, T, W, H)
        ga_out = jnp.sum(a * la32, axis=(2, 3, 4))
    else:
        a = jax.nn.sigmoid(c)
        ga_out = jnp.mean(a * la32, axis=(2, 3, 4))
    return c, ga_out


if __name__ == "__main__":
    root = jax.random.PRNGKey(0)

    # Small shapes consistent with the attention head of InceptionI3d_Attention.
    # (name, dtype, N, C, T, W, H, normalize_attn, s_tile, tol)
    cases = [
        ("vpu_f32_softmax",         jnp.float32,  2,   4, 1, 16, 16, True,  128,  1e-4),
        ("vpu_f32_softmax_ragged",  jnp.float32,  2,   4, 1, 14, 14, True,  128,  1e-4),
        ("vpu_f32_sigmoid_ragged",  jnp.float32,  2,   4, 2, 14, 14, False, 128,  1e-4),
        ("vpu_bf16_softmax",        jnp.bfloat16, 2,   8, 1, 16, 16, True,  None, 3e-2),
        ("mxu_bf16_softmax_tiled",  jnp.bfloat16, 2,  96, 1, 16, 16, True,  128,  3e-2),
        ("mxu_f32_softmax_tiled",   jnp.float32,  2,  96, 1, 16, 16, True,  128,  1e-2),
        ("mxu_f32_sigmoid_ragged",  jnp.float32,  2,  96, 1, 14, 14, False, None, 1e-2),
        ("mxu_bf16_sigmoid_ragged", jnp.bfloat16, 2, 128, 2, 14, 14, False, 128,  3e-2),
    ]

    for i, (name, dtype, N, C, T, W, H, norm, ts, tol) in enumerate(cases):
        k_la, k_ga, k_w = jax.random.split(jax.random.fold_in(root, i), 3)
        # Quantize test inputs through bf16 so the MXU numerics are exact in
        # both dtypes; the kernel itself accepts arbitrary f32/bf16 inputs.
        la = (jax.random.normal(k_la, (N, C, T, W, H), dtype=jnp.float32)
              .astype(jnp.bfloat16).astype(dtype))
        ga = (jax.random.normal(k_ga, (N, C, T, W, H), dtype=jnp.float32)
              .astype(jnp.bfloat16).astype(dtype))
        weight = (0.5 * jax.random.normal(k_w, (1, C, 1, 1, 1),
                                          dtype=jnp.float32)
                  ).astype(jnp.bfloat16).astype(dtype)

        c_out, g_out = linear_attention_block_3d(la, ga, weight, norm, s_tile=ts)
        jax.block_until_ready((c_out, g_out))

        c_ref, g_ref = _reference(la, ga, weight, norm)
        assert c_out.shape == (N, 1, T, W, H), f"{name}: bad c shape {c_out.shape}"
        assert g_out.shape == (N, C), f"{name}: bad ga shape {g_out.shape}"
        assert jnp.allclose(c_out.astype(jnp.float32), c_ref,
                            rtol=tol, atol=tol), f"{name}: c mismatch"
        assert jnp.allclose(g_out.astype(jnp.float32), g_ref,
                            rtol=tol, atol=tol), f"{name}: ga mismatch"

    print("KERNEL_OK")
</pallas_src>

<mosaic_0001>
module attributes {stable_mosaic.version = 11 : i64} {
  func.func @_attn_kernel(%arg0: i32, %arg1: i32, %arg2: memref<4x1xf32, #tpu.memory_space<vmem>>, %arg3: memref<2x4x128xf32, #tpu.memory_space<vmem>>, %arg4: memref<2x4x128xf32, #tpu.memory_space<vmem>>, %arg5: memref<2x1x128xf32, #tpu.memory_space<vmem>>, %arg6: memref<2x1x4xf32, #tpu.memory_space<vmem>>, %arg7: memref<2x1xf32, #tpu.memory_space<vmem>>, %arg8: memref<2x1xf32, #tpu.memory_space<vmem>>, %arg9: memref<2x4xf32, #tpu.memory_space<vmem>>) attributes {dimension_semantics = [#tpu.dimension_semantics<parallel>, #tpu.dimension_semantics<arbitrary>], iteration_bounds = array<i64: 1, 2>, scalar_prefetch = 0 : i64, scratch_operands = 3 : i64, tpu.core_type = #tpu.core_type<tc>, window_params = [{pipeline_mode = #tpu.pipeline_mode<synchronous>, transform_indices = @transform_0, window_bounds = array<i64: 4, 1>}, {transform_indices = @transform_1, window_bounds = array<i64: 2, 4, 128>}, {transform_indices = @transform_2, window_bounds = array<i64: 2, 4, 128>}, {transform_indices = @transform_3, window_bounds = array<i64: 2, 1, 128>}, {transform_indices = @transform_4, window_bounds = array<i64: 2, 1, 4>}]} {
    %c0 = arith.constant 0 : index
    %c0_0 = arith.constant 0 : index
    %c0_1 = arith.constant 0 : index
    %0 = vector.load %arg3[%c0, %c0_0, %c0_1] : memref<2x4x128xf32, #tpu.memory_space<vmem>>, vector<2x4x128xf32>
    %c0_2 = arith.constant 0 : index
    %c0_3 = arith.constant 0 : index
    %c0_4 = arith.constant 0 : index
    %1 = vector.load %arg4[%c0_2, %c0_3, %c0_4] : memref<2x4x128xf32, #tpu.memory_space<vmem>>, vector<2x4x128xf32>
    %2 = arith.addf %0, %1 : vector<2x4x128xf32>
    %c0_5 = arith.constant 0 : index
    %c0_6 = arith.constant 0 : index
    %3 = vector.load %arg2[%c0_5, %c0_6] : memref<4x1xf32, #tpu.memory_space<vmem>>, vector<4x1xf32>
    %4 = vector.shape_cast %3 : vector<4x1xf32> to vector<1x4x1xf32>
    %5 = vector.broadcast %4 : vector<1x4x1xf32> to vector<2x4x128xf32>
    %6 = arith.mulf %2, %5 : vector<2x4x128xf32>
    %cst = arith.constant dense<0.000000e+00> : vector<2x128xf32>
    %7 = vector.multi_reduction <add>, %6, %cst [1] : vector<2x4x128xf32> to vector<2x128xf32>
    %8 = vector.shape_cast %7 : vector<2x128xf32> to vector<2x1x128xf32>
    %c0_7 = arith.constant 0 : index
    %c0_8 = arith.constant 0 : index
    %c0_9 = arith.constant 0 : index
    %9 = vector.load %arg5[%c0_7, %c0_8, %c0_9] : memref<2x1x128xf32, #tpu.memory_space<vmem>>, vector<2x1x128xf32>
    tpu.vector_store %arg5[%c0_7, %c0_8, %c0_9], %8 {strides = array<i32>} : memref<2x1x128xf32, #tpu.memory_space<vmem>>, vector<2x1x128xf32>,
    %c0_i32 = arith.constant 0 : i32
    %10 = arith.cmpi eq, %arg1, %c0_i32 : i32
    %11 = arith.extui %10 : i1 to i32
    %c0_i32_10 = arith.constant 0 : i32
    %12 = arith.cmpi ne, %11, %c0_i32_10 : i32
    scf.if %12 {
      %cst_27 = arith.constant 0xFF800000 : f32
      %41 = vector.broadcast %cst_27 : f32 to vector<2x1xf32>
      %c0_28 = arith.constant 0 : index
      %c0_29 = arith.constant 0 : index
      %42 = vector.load %arg7[%c0_28, %c0_29] : memref<2x1xf32, #tpu.memory_space<vmem>>, vector<2x1xf32>
      tpu.vector_store %arg7[%c0_28, %c0_29], %41 {strides = array<i32>} : memref<2x1xf32, #tpu.memory_space<vmem>>, vector<2x1xf32>,
      %cst_30 = arith.constant 0.000000e+00 : f32
      %43 = vector.broadcast %cst_30 : f32 to vector<2x1xf32>
      %c0_31 = arith.constant 0 : index
      %c0_32 = arith.constant 0 : index
      %44 = vector.load %arg8[%c0_31, %c0_32] : memref<2x1xf32, #tpu.memory_space<vmem>>, vector<2x1xf32>
      tpu.vector_store %arg8[%c0_31, %c0_32], %43 {strides = array<i32>} : memref<2x1xf32, #tpu.memory_space<vmem>>, vector<2x1xf32>,
      %cst_33 = arith.constant 0.000000e+00 : f32
      %45 = vector.broadcast %cst_33 : f32 to vector<2x4xf32>
      %c0_34 = arith.constant 0 : index
      %c0_35 = arith.constant 0 : index
      %46 = vector.load %arg9[%c0_34, %c0_35] : memref<2x4xf32, #tpu.memory_space<vmem>>, vector<2x4xf32>
      tpu.vector_store %arg9[%c0_34, %c0_35], %45 {strides = array<i32>} : memref<2x4xf32, #tpu.memory_space<vmem>>, vector<2x4xf32>,
    } else {
    }
    %c0_11 = arith.constant 0 : index
    %c0_12 = arith.constant 0 : index
    %13 = vector.load %arg7[%c0_11, %c0_12] : memref<2x1xf32, #tpu.memory_space<vmem>>, vector<2x1xf32>
    %cst_13 = arith.constant dense<0xFF800000> : vector<2xf32>
    %14 = vector.multi_reduction <maximumf>, %7, %cst_13 [1] : vector<2x128xf32> to vector<2xf32>
    %15 = vector.shape_cast %14 : vector<2xf32> to vector<2x1xf32>
    %16 = arith.maximumf %13, %15 : vector<2x1xf32>
    %17 = arith.subf %13, %16 : vector<2x1xf32>
    %18 = math.exp %17 : vector<2x1xf32>
    %19 = vector.broadcast %16 : vector<2x1xf32> to vector<2x128xf32>
    %20 = arith.subf %7, %19 : vector<2x128xf32>
    %21 = math.exp %20 : vector<2x128xf32>
    %c0_14 = arith.constant 0 : index
    %c0_15 = arith.constant 0 : index
    %22 = vector.load %arg8[%c0_14, %c0_15] : memref<2x1xf32, #tpu.memory_space<vmem>>, vector<2x1xf32>
    %23 = arith.mulf %18, %22 : vector<2x1xf32>
    %cst_16 = arith.constant dense<0.000000e+00> : vector<2xf32>
    %24 = vector.multi_reduction <add>, %21, %cst_16 [1] : vector<2x128xf32> to vector<2xf32>
    %25 = vector.shape_cast %24 : vector<2xf32> to vector<2x1xf32>
    %26 = arith.addf %23, %25 : vector<2x1xf32>
    %c0_17 = arith.constant 0 : index
    %c0_18 = arith.constant 0 : index
    %27 = vector.load %arg8[%c0_17, %c0_18] : memref<2x1xf32, #tpu.memory_space<vmem>>, vector<2x1xf32>
    tpu.vector_store %arg8[%c0_17, %c0_18], %26 {strides = array<i32>} : memref<2x1xf32, #tpu.memory_space<vmem>>, vector<2x1xf32>,
    %c0_19 = arith.constant 0 : index
    %c0_20 = arith.constant 0 : index
    %28 = vector.load %arg9[%c0_19, %c0_20] : memref<2x4xf32, #tpu.memory_space<vmem>>, vector<2x4xf32>
    %29 = vector.broadcast %18 : vector<2x1xf32> to vector<2x4xf32>
    %30 = arith.mulf %29, %28 : vector<2x4xf32>
    %31 = vector.shape_cast %21 : vector<2x128xf32> to vector<2x1x128xf32>
    %32 = vector.broadcast %31 : vector<2x1x128xf32> to vector<2x4x128xf32>
    %33 = arith.mulf %0, %32 : vector<2x4x128xf32>
    %cst_21 = arith.constant dense<0.000000e+00> : vector<2x4xf32>
    %34 = vector.multi_reduction <add>, %33, %cst_21 [2] : vector<2x4x128xf32> to vector<2x4xf32>
    %35 = arith.addf %30, %34 : vector<2x4xf32>
    %c0_22 = arith.constant 0 : index
    %c0_23 = arith.constant 0 : index
    %36 = vector.load %arg9[%c0_22, %c0_23] : memref<2x4xf32, #tpu.memory_space<vmem>>, vector<2x4xf32>
    tpu.vector_store %arg9[%c0_22, %c0_23], %35 {strides = array<i32>} : memref<2x4xf32, #tpu.memory_space<vmem>>, vector<2x4xf32>,
    %c0_24 = arith.constant 0 : index
    %c0_25 = arith.constant 0 : index
    %37 = vector.load %arg7[%c0_24, %c0_25] : memref<2x1xf32, #tpu.memory_space<vmem>>, vector<2x1xf32>
    tpu.vector_store %arg7[%c0_24, %c0_25], %16 {strides = array<i32>} : memref<2x1xf32, #tpu.memory_space<vmem>>, vector<2x1xf32>,
    %c1_i32 = arith.constant 1 : i32
    %38 = arith.cmpi eq, %arg1, %c1_i32 : i32
    %39 = arith.extui %38 : i1 to i32
    %c0_i32_26 = arith.constant 0 : i32
    %40 = arith.cmpi ne, %39, %c0_i32_26 : i32
    scf.if %40 {
      %c0_27 = arith.constant 0 : index
      %c0_28 = arith.constant 0 : index
      %41 = vector.load %arg8[%c0_27, %c0_28] : memref<2x1xf32, #tpu.memory_space<vmem>>, vector<2x1xf32>
      %42 = tpu.reciprocal %41 {approx = true} : vector<2x1xf32> -> vector<2x1xf32>
      %43 = arith.mulf %41, %42 : vector<2x1xf32>
      %cst_29 = arith.constant 2.000000e+00 : f32
      %44 = vector.broadcast %cst_29 : f32 to vector<2x1xf32>
      %45 = arith.subf %44, %43 : vector<2x1xf32>
      %46 = arith.mulf %42, %45 : vector<2x1xf32>
      %c0_30 = arith.constant 0 : index
      %c0_31 = arith.constant 0 : index
      %47 = vector.load %arg9[%c0_30, %c0_31] : memref<2x4xf32, #tpu.memory_space<vmem>>, vector<2x4xf32>
      %48 = vector.broadcast %46 : vector<2x1xf32> to vector<2x4xf32>
      %49 = arith.mulf %47, %48 : vector<2x4xf32>
      %50 = vector.shape_cast %49 : vector<2x4xf32> to vector<2x1x4xf32>
      %c0_32 = arith.constant 0 : index
      %c0_33 = arith.constant 0 : index
      %c0_34 = arith.constant 0 : index
      %51 = vector.load %arg6[%c0_32, %c0_33, %c0_34] : memref<2x1x4xf32, #tpu.memory_space<vmem>>, vector<2x1x4xf32>
      tpu.vector_store %arg6[%c0_32, %c0_33, %c0_34], %50 {strides = array<i32>} : memref<2x1x4xf32, #tpu.memory_space<vmem>>, vector<2x1x4xf32>,
    } else {
    }
    return
  }
  func.func @transform_0(%arg0: i32, %arg1: i32) -> (i32, i32) {
    %c0_i32 = arith.constant 0 : i32
    %c0_i32_0 = arith.constant 0 : i32
    %c0_i32_1 = arith.constant 0 : i32
    return %c0_i32, %c0_i32_0 : i32, i32
  }
  func.func @transform_1(%arg0: i32, %arg1: i32) -> (i32, i32, i32) {
    %c0_i32 = arith.constant 0 : i32
    %c0_i32_0 = arith.constant 0 : i32
    return %arg0, %c0_i32, %arg1 : i32, i32, i32
  }
  func.func @transform_2(%arg0: i32, %arg1: i32) -> (i32, i32, i32) {
    %c0_i32 = arith.constant 0 : i32
    %c0_i32_0 = arith.constant 0 : i32
    return %arg0, %c0_i32, %arg1 : i32, i32, i32
  }
  func.func @transform_3(%arg0: i32, %arg1: i32) -> (i32, i32, i32) {
    %c0_i32 = arith.constant 0 : i32
    %c0_i32_0 = arith.constant 0 : i32
    return %arg0, %c0_i32, %arg1 : i32, i32, i32
  }
  func.func @transform_4(%arg0: i32, %arg1: i32) -> (i32, i32, i32) {
    %c0_i32 = arith.constant 0 : i32
    %c0_i32_0 = arith.constant 0 : i32
    %c0_i32_1 = arith.constant 0 : i32
    return %arg0, %c0_i32, %c0_i32_0 : i32, i32, i32
  }
}

</mosaic_0001>

<llo_original>
// kernel: tpu_custom_call.1
$region0: #{tpu_custom_call.1}
  #allocation0 [shape = 'u32[]', space=smem, size = 0x4, offset = 0x4, fixed_abs, tag = 'smem constant byte address 0x4 - core index']
  #allocation1 [shape = 'u32[144,128]{1,0:T(1,128)}', space=vmem, size = 0x12000, scoped, tag = 'internal scratch']
  #allocation2 [shape = 'f32[2,1]{1,0:T(2,128)}', space=vmem, size = 0x400, scoped, tag = 'scratch operand']
  #allocation3 [shape = 'f32[2,1]{1,0:T(2,128)}', space=vmem, size = 0x400, scoped, tag = 'scratch operand']
  #allocation4 [shape = 'f32[2,4]{1,0:T(2,128)}', space=vmem, size = 0x400, scoped, tag = 'scratch operand']
  %s0 = inlined_call_operand.vmem [shape: f32[4,1], index: 0, kind: input, shape index: {}]
  %s1 = inlined_call_operand.hbm [shape: f32[2,4,256], index: 1, kind: input, shape index: {}]
  %s2 = inlined_call_operand.hbm [shape: f32[2,4,256], index: 2, kind: input, shape index: {}]
  %s3 = inlined_call_operand.hbm [shape: f32[2,1,256], index: 3, kind: output, shape index: {0}]
  %s4 = inlined_call_operand.hbm [shape: f32[2,1,4], index: 4, kind: output, shape index: {1}]
  %5 = xla_tuple %s3, %s4
  %s6 = sld [smem:[#allocation0]]
  $region69: #{tpu_custom_call.1} parent=0
    _
  %s8 = ssub.s32 1, %s6
  %s9 = scalar_select 0, %s8, %s6
  $region1: #{tpu_custom_call.1} parent=0
    #allocation5 [shape = 'u8[8192]{0}', space=vmem, size = 0x2000, scoped, tag = 'input window, operand 1']
    #allocation6 [shape = 's32[2]{0}', space=sflag, size = 0x8, scoped, tag = 'scoped memory for tpu_custom_call.1']
    #allocation7 [shape = 's32[2]{0}', space=sflag, size = 0x8, scoped, tag = 'scoped memory for tpu_custom_call.1']
    #allocation8 [shape = 'u8[8192]{0}', space=vmem, size = 0x2000, scoped, tag = 'input window, operand 2']
    #allocation9 [shape = 's32[2]{0}', space=sflag, size = 0x8, scoped, tag = 'scoped memory for tpu_custom_call.1']
    #allocation10 [shape = 'u8[2048]{0}', space=vmem, size = 0x800, scoped, tag = 'output window, operand 0']
    #allocation11 [shape = 'u8[1024]{0}', space=vmem, size = 0x400, scoped, tag = 'output window, operand 1, single buffered']
    #allocation12 [shape = 's32[1]{0}', space=sflag, size = 0x4, scoped, tag = 'scoped memory for tpu_custom_call.1']
    %10 = vsyncpa [#allocation6], 0
    %s11 = scalar_lea.sflag [#allocation6], 1
    %12 = vsyncpa %s11, 0
    %13 = vsyncpa [#allocation9], 0
    %s14 = scalar_lea.sflag [#allocation9], 1
    %15 = vsyncpa %s14, 0
    %16 = vsyncpa [#allocation7], 0
    %s17 = scalar_lea.sflag [#allocation7], 1
    %18 = vsyncpa %s17, 0
    %19 = vsyncpa [#allocation12], 0
    loop: start=0, step=1, limit=4
    $region2: #{tpu_custom_call.1} parent=1 // loop_pre_header
      _
    $region3: #{tpu_custom_call.1} parent=1 // loop_header
      %s21 = sphi 0, %s25
      %p22 = scmp.ge.s32.totalorder %s21, 4
      %s28 = sphi 0, %s40
      %s29 = sphi 0, %s36
      %s30 = sphi 0, %s28
      %s31 = sphi 0, %s29
      %s32 = sphi 0, %s30
      %s33 = sphi 0, %s31
      %s41 = sphi 0, %s41
      %s43 = sphi 0, %s41
      %s44 = sphi 0, %s43
      %s58 = sphi 0, %s44
      %s66 = sphi 0, %s68
      %s69 = sphi 0, %s66
      %s70 = sphi 0, %s69
      %s86 = sphi 0, %s70
      %s94 = sphi 0, %s96
      %s97 = sphi 0, %s94
      %s98 = sphi 0, %s97
      %s114 = sphi 0, %s98
      %s122 = sphi 0, %s124
      %s125 = sphi 0, %s122
      %s126 = sphi 0, %s125
      %s142 = sphi 0, %s126
      %s148 = sphi 0, %s150
      %s151 = sphi 0, %s148
      %s152 = sphi 0, %s151
      %s168 = sphi 0, %s152
    $region4: #{tpu_custom_call.1} parent=1 // loop_header_branch
      %24 = sbr.rel (%p22) target = $region8
    $region5: #{tpu_custom_call.1} parent=1 // loop_body
      %s26 = ssub.s32 %s21, 1
      %s27 = ssub.s32 %s21, 2
      %s34 = sadd.s32 1, %s29
      %p35 = scmp.ge.s32.totalorder %s34, 2
      %s36 = scalar_select %p35, 0, %s34
      %s37 = sadd.s32 1, %s28
      %s38 = scalar_select %p35, %s37, %s28
      %p39 = scmp.ge.s32.totalorder %s38, 1
      %s40 = scalar_select %p39, 0, %s38
      %s42 = sadd.s32 %s41, 1
      %p45 = scmp.eq.s32.totalorder %s21, 1
      %p46 = scmp.ne.s32.totalorder %s41, %s43
      %p47 = scmp.eq.s32.totalorder %s21, 0
      %p48 = por %p46, %p47
      %p49 = scmp.ne.s32.totalorder %s41, %s43
      %p50 = scmp.eq.s32.totalorder %s26, 1
      %p51 = por %p49, %p50
      %p52 = scmp.ne.s32.totalorder %s43, %s44
      %p53 = scmp.eq.s32.totalorder %s26, 0
      %p54 = por %p52, %p53
      %p55 = scmp.ne.s32.totalorder %s43, %s44
      %p56 = scmp.eq.s32.totalorder %s27, 1
      %p57 = por %p55, %p56
      %p59 = scmp.ne.s32.totalorder %s44, %s58
      %p60 = scmp.eq.s32.totalorder %s27, 0
      %p61 = por %p59, %p60
      %s62 = ssub.s32 %s28, %s40
      %s63 = ssub.s32 %s29, %s36
      %s64 = sor.u32 %s62, %s63
      %p65 = scmp.eq.s32.totalorder %s64, 0
      %s67 = sadd.s32 %s66, 1
      %s68 = scalar_select %p65, %s66, %s67
      %p71 = pneg %p65
      %p72 = scmp.eq.s32.totalorder %s21, 1
      %p73 = por %p71, %p72
      %p74 = scmp.ne.s32.totalorder %s66, %s69
      %p75 = scmp.eq.s32.totalorder %s21, 0
      %p76 = por %p74, %p75
      %p77 = scmp.ne.s32.totalorder %s66, %s69
      %p78 = scmp.eq.s32.totalorder %s26, 1
      %p79 = por %p77, %p78
      %p80 = scmp.ne.s32.totalorder %s69, %s70
      %p81 = scmp.eq.s32.totalorder %s26, 0
      %p82 = por %p80, %p81
      %p83 = scmp.ne.s32.totalorder %s69, %s70
      %p84 = scmp.eq.s32.totalorder %s27, 1
      %p85 = por %p83, %p84
      %p87 = scmp.ne.s32.totalorder %s70, %s86
      %p88 = scmp.eq.s32.totalorder %s27, 0
      %p89 = por %p87, %p88
      %s90 = ssub.s32 %s28, %s40
      %s91 = ssub.s32 %s29, %s36
      %s92 = sor.u32 %s90, %s91
      %p93 = scmp.eq.s32.totalorder %s92, 0
      %s95 = sadd.s32 %s94, 1
      %s96 = scalar_select %p93, %s94, %s95
      %p99 = pneg %p93
      %p100 = scmp.eq.s32.totalorder %s21, 1
      %p101 = por %p99, %p100
      %p102 = scmp.ne.s32.totalorder %s94, %s97
      %p103 = scmp.eq.s32.totalorder %s21, 0
      %p104 = por %p102, %p103
      %p105 = scmp.ne.s32.totalorder %s94, %s97
      %p106 = scmp.eq.s32.totalorder %s26, 1
      %p107 = por %p105, %p106
      %p108 = scmp.ne.s32.totalorder %s97, %s98
      %p109 = scmp.eq.s32.totalorder %s26, 0
      %p110 = por %p108, %p109
      %p111 = scmp.ne.s32.totalorder %s97, %s98
      %p112 = scmp.eq.s32.totalorder %s27, 1
      %p113 = por %p111, %p112
      %p115 = scmp.ne.s32.totalorder %s98, %s114
      %p116 = scmp.eq.s32.totalorder %s27, 0
      %p117 = por %p115, %p116
      %s118 = ssub.s32 %s28, %s40
      %s119 = ssub.s32 %s29, %s36
      %s120 = sor.u32 %s118, %s119
      %p121 = scmp.eq.s32.totalorder %s120, 0
      %s123 = sadd.s32 %s122, 1
      %s124 = scalar_select %p121, %s122, %s123
      %p127 = pneg %p121
      %p128 = scmp.eq.s32.totalorder %s21, 1
      %p129 = por %p127, %p128
      %p130 = scmp.ne.s32.totalorder %s122, %s125
      %p131 = scmp.eq.s32.totalorder %s21, 0
      %p132 = por %p130, %p131
      %p133 = scmp.ne.s32.totalorder %s122, %s125
      %p134 = scmp.eq.s32.totalorder %s26, 1
      %p135 = por %p133, %p134
      %p136 = scmp.ne.s32.totalorder %s125, %s126
      %p137 = scmp.eq.s32.totalorder %s26, 0
      %p138 = por %p136, %p137
      %p139 = scmp.ne.s32.totalorder %s125, %s126
      %p140 = scmp.eq.s32.totalorder %s27, 1
      %p141 = por %p139, %p140
      %p143 = scmp.ne.s32.totalorder %s126, %s142
      %p144 = scmp.eq.s32.totalorder %s27, 0
      %p145 = por %p143, %p144
      %s146 = ssub.s32 %s28, %s40
      %p147 = scmp.eq.s32.totalorder %s146, 0
      %s149 = sadd.s32 %s148, 1
      %s150 = scalar_select %p147, %s148, %s149
      %p153 = pneg %p147
      %p154 = scmp.eq.s32.totalorder %s21, 1
      %p155 = por %p153, %p154
      %p156 = scmp.ne.s32.totalorder %s148, %s151
      %p157 = scmp.eq.s32.totalorder %s21, 0
      %p158 = por %p156, %p157
      %p159 = scmp.ne.s32.totalorder %s148, %s151
      %p160 = scmp.eq.s32.totalorder %s26, 1
      %p161 = por %p159, %p160
      %p162 = scmp.ne.s32.totalorder %s151, %s152
      %p163 = scmp.eq.s32.totalorder %s26, 0
      %p164 = por %p162, %p163
      %p165 = scmp.ne.s32.totalorder %s151, %s152
      %p166 = scmp.eq.s32.totalorder %s27, 1
      %p167 = por %p165, %p166
      %p169 = scmp.ne.s32.totalorder %s152, %s168
      %p170 = scmp.eq.s32.totalorder %s27, 0
      %p171 = por %p169, %p170
      %p172 = scmp.le.s32.totalorder 1, %s21
      %p173 = scmp.lt.s32.totalorder %s21, 3
      %p174 = pnand %p172, %p173
      %p175 = pneg %p174
      // Predicated region
      $region9: #{tpu_custom_call.1} parent=5 // pred_check
        _
      $region10: #{tpu_custom_call.1} parent=5 // pred_check_branch
        %177 = sbr.rel (%p174) target = $region12
      $region11: #{tpu_custom_call.1} parent=5 // pred_region
        %s178 = ssub.s32 %s21, 1
        // Predicated region
        $region13: #{tpu_custom_call.1} parent=11 // pred_check
          %p179 = pneg %p54
        $region14: #{tpu_custom_call.1} parent=11 // pred_check_branch
          %181 = sbr.rel (%p179) target = $region16
        $region15: #{tpu_custom_call.1} parent=11 // pred_region
          _
        $region16: #{tpu_custom_call.1} parent=11 // pred_fallthru
          _
      $region12: #{tpu_custom_call.1} parent=5 // pred_fallthru
        _
      %p182 = scmp.lt.s32.totalorder %s21, 2
      // Predicated region
      $region17: #{tpu_custom_call.1} parent=5 // pred_check
        %p183 = pneg %p182
      $region18: #{tpu_custom_call.1} parent=5 // pred_check_branch
        %185 = sbr.rel (%p183) target = $region20
      $region19: #{tpu_custom_call.1} parent=5 // pred_region
        // Predicated region
        $region21: #{tpu_custom_call.1} parent=19 // pred_check
          %p186 = pneg %p76
        $region22: #{tpu_custom_call.1} parent=19 // pred_check_branch
          %188 = sbr.rel (%p186) target = $region24
        $region23: #{tpu_custom_call.1} parent=19 // pred_region
          %s189 = sand.u32 %s66, 1
          %s190 = scalar_lea.sflag [#allocation6], %s189
          %s191 = sand.u32 %s66, 1
          %s192 = smul.addr %s191, 8
          %s193 = scalar_lea.vmem [#allocation5], %s192
          %s194 = smul.u32 2, %s28
          %s196 = ssub.s32 128, 128
          %197 = vsyncadd %s190, %s196
          %s198 = smul.addr %s194, 2
          %s199 = sadd.s32 %s29, %s198
          %s200 = smul.addr %s199, 64
          %s201 = scalar_lea.hbm %s1, %s200
          %s202 = sshll.u32 %s193, 4
          %s203 = int_to_ptr.vmem [resolvable:$true] %s202
          %208 = dma.hbm_to_vmem [thread:$0]  %s201, 128, %s203, %s190, 128, 64, 4
        $region24: #{tpu_custom_call.1} parent=19 // pred_fallthru
          _
        // Predicated region
        $region25: #{tpu_custom_call.1} parent=19 // pred_check
          %p209 = pneg %p104
        $region26: #{tpu_custom_call.1} parent=19 // pred_check_branch
          %211 = sbr.rel (%p209) target = $region28
        $region27: #{tpu_custom_call.1} parent=19 // pred_region
          %s212 = sand.u32 %s94, 1
          %s213 = scalar_lea.sflag [#allocation9], %s212
          %s214 = sand.u32 %s94, 1
          %s215 = smul.addr %s214, 8
          %s216 = scalar_lea.vmem [#allocation8], %s215
          %s217 = smul.u32 2, %s28
          %s219 = ssub.s32 128, 128
          %220 = vsyncadd %s213, %s219
          %s221 = smul.addr %s217, 2
          %s222 = sadd.s32 %s29, %s221
          %s223 = smul.addr %s222, 64
          %s224 = scalar_lea.hbm %s2, %s223
          %s225 = sshll.u32 %s216, 4
          %s226 = int_to_ptr.vmem [resolvable:$true] %s225
          %231 = dma.hbm_to_vmem [thread:$0]  %s224, 128, %s226, %s213, 128, 64, 4
        $region28: #{tpu_custom_call.1} parent=19 // pred_fallthru
          _
      $region20: #{tpu_custom_call.1} parent=5 // pred_fallthru
        _
      %p232 = scmp.le.s32.totalorder 1, %s21
      %p233 = scmp.lt.s32.totalorder %s21, 3
      %p234 = pnand %p232, %p233
      %p235 = pneg %p234
      // Predicated region
      $region29: #{tpu_custom_call.1} parent=5 // pred_check
        _
      $region30: #{tpu_custom_call.1} parent=5 // pred_check_branch
        %237 = sbr.rel (%p234) target = $region32
      $region31: #{tpu_custom_call.1} parent=5 // pred_region
        %s238 = ssub.s32 %s21, 1
        %s239 = sand.u32 %s69, 1
        %s240 = scalar_lea.sflag [#allocation6], %s239
        %s241 = sand.u32 %s69, 1
        %s242 = smul.addr %s241, 8
        %s243 = scalar_lea.vmem [#allocation5], %s242
        // Predicated region
        $region33: #{tpu_custom_call.1} parent=31 // pred_check
          %p244 = pneg %p82
        $region34: #{tpu_custom_call.1} parent=31 // pred_check_branch
          %246 = sbr.rel (%p244) target = $region36
        $region35: #{tpu_custom_call.1} parent=31 // pred_region
          %247 = dma.done %s240, 128
        $region36: #{tpu_custom_call.1} parent=31 // pred_fallthru
          _
        %s248 = sand.u32 %s97, 1
        %s249 = scalar_lea.sflag [#allocation9], %s248
        %s250 = sand.u32 %s97, 1
        %s251 = smul.addr %s250, 8
        %s252 = scalar_lea.vmem [#allocation8], %s251
        // Predicated region
        $region37: #{tpu_custom_call.1} parent=31 // pred_check
          %p253 = pneg %p110
        $region38: #{tpu_custom_call.1} parent=31 // pred_check_branch
          %255 = sbr.rel (%p253) target = $region40
        $region39: #{tpu_custom_call.1} parent=31 // pred_region
          %256 = dma.done %s249, 128
        $region40: #{tpu_custom_call.1} parent=31 // pred_fallthru
          _
        %p257 = pneg %p54
        %p258 = pneg %p51
        %s259 = sand.u32 %s69, 1
        %s260 = scalar_lea.sflag [#allocation6], %s259
        %s261 = sand.u32 %s69, 1
        %s262 = smul.addr %s261, 8
        %s263 = scalar_lea.vmem [#allocation5], %s262
        %p264 = pneg %p82
        %p265 = pneg %p79
        %s266 = sand.u32 %s97, 1
        %s267 = scalar_lea.sflag [#allocation9], %s266
        %s268 = sand.u32 %s97, 1
        %s269 = smul.addr %s268, 8
        %s270 = scalar_lea.vmem [#allocation8], %s269
        %p271 = pneg %p110
        %p272 = pneg %p107
        %p273 = pneg %p138
        %p274 = pneg %p135
        %s275 = sand.u32 %s125, 1
        %s276 = scalar_lea.sflag [#allocation7], %s275
        %s277 = sand.u32 %s125, 1
        %s278 = smul.addr %s277, 2
        %s279 = scalar_lea.vmem [#allocation10], %s278
        %p280 = pneg %p164
        %p281 = pneg %p161
        %s282 = smul.u32 2, %s30
        %s283 = smul.u32 2, %s30
        %s284 = smul.u32 2, %s30
        %s285 = smul.u32 2, %s30
        %v286 = vld [vmem:[%s243] sm:$0xf]
        %v287 = vld [vmem:[%s243 + $0x4] sm:$0xf]
        %v288 = vld [vmem:[%s252] sm:$0xf]
        %v289 = vld [vmem:[%s252 + $0x4] sm:$0xf]
        %v290 = vadd.f32 %v286, %v288
        %v291 = vadd.f32 %v287, %v289
        %v292 = vld [vmem:[%s0] sm:$0xf]
        %294 = vset.pattern.permute.xlu0 0
        %295 = vperm.xlu0 %294, %v292
        %v296 = vpop.permute.xlu0 %295
        %v298 = vmul.f32 %v290, %v296
        %v299 = vmul.f32 %v291, %v296
        %vm300 = vcmask 1043456
        %v301 = vsel %vm300, %v298, 0.0
        %v302 = vrot.slane %v301, 4
        %v303 = vadd.f32 %v301, %v302
        %v304 = vrot.slane %v303, 2
        %v305 = vadd.f32 %v303, %v304
        %v306 = vrot.slane %v305, 1
        %v307 = vadd.f32 %v305, %v306
        %v308 = vsel %vm300, %v299, 0.0
        %v309 = vrot.slane %v308, 4
        %v310 = vadd.f32 %v308, %v309
        %v311 = vrot.slane %v310, 2
        %v312 = vadd.f32 %v310, %v311
        %v313 = vrot.slane %v312, 1
        %v314 = vadd.f32 %v312, %v313
        %315 = vst [vmem:[%s279] sm:$0x1] %v307
        %316 = vst [vmem:[%s279 + $0x1] sm:$0x1] %v314
        %p317 = scmp.eq.s32.totalorder %s31, 0
        // Predicated region
        $region41: #{tpu_custom_call.1} parent=31 // pred_check
          %p318 = pneg %p317
        $region42: #{tpu_custom_call.1} parent=31 // pred_check_branch
          %320 = sbr.rel (%p318) target = $region44
        $region43: #{tpu_custom_call.1} parent=31 // pred_region
          %vm321 = vcmask 1024
          %322 = vst.msk [vmem:[#allocation2] sm:$0x3] %vm321, -inf
          %323 = vst.msk [vmem:[#allocation3] sm:$0x3] %vm321, 0.0
          %vm324 = vcmask 25600
          %325 = vst.msk [vmem:[#allocation4] sm:$0x3] %vm324, 0.0
        $region44: #{tpu_custom_call.1} parent=31 // pred_fallthru
          _
        %v326 = vld [vmem:[#allocation2] sm:$0x3]
        %vm329 = vcmask 1041409
        %v330 = vsel %vm329, %v314, %v307
        %vm332 = vcmask 1041408
        %v333 = vsel %vm332, %v330, -inf
        %334 = vmax.xlane.f32.xlu0 %v333
        %v335 = vpop.xlane.xlu0 %334
        %v336 = vmax.f32 %v326, %v335
        %v337 = vsub.f32 %v326, %v336
        %v338 = vmul.f32 %v337, 1.442695
        %v339 = vpow.pop %v338
        %341 = vset.pattern.permute.xlu0 0
        %342 = vperm.xlu0 %341, %v336
        %v343 = vpop.permute.xlu0 %342
        %v344 = vrot.slane %v343, 1
        %v347 = vsub.f32 %v307, %v343
        %v348 = vsub.f32 %v314, %v344
        %v349 = vmul.f32 %v347, 1.442695
        %v350 = vpow.pop %v349
        %v351 = vmul.f32 %v348, 1.442695
        %v352 = vpow.pop %v351
        %v353 = vld [vmem:[#allocation3] sm:$0x3]
        %v354 = vmul.f32 %v339, %v353
        %v357 = vrot.slane %v352, 7
        %v358 = vsel %vm329, %v357, %v350
        %v360 = vsel %vm332, %v358, 0.0
        %361 = vadd.xlane.f32.xlu0 %v360
        %v362 = vpop.xlane.xlu0 %361
        %v363 = vadd.f32 %v354, %v362
        %vm364 = vcmask 1024
        %365 = vst.msk [vmem:[#allocation3] sm:$0x3] %vm364, %v363
        %v366 = vld [vmem:[#allocation4] sm:$0x3]
        %368 = vset.pattern.permute.xlu0 0
        %369 = vperm.xlu0 %368, %v339
        %v370 = vpop.permute.xlu0 %369
        %v372 = vmul.f32 %v370, %v366
        %v373 = vlaneseq
        %v374 = vshrl.u32 %v373, 7
        %v375 = vsub.s32 0, %v374
        %v376 = vrot.slane %v350, %v375
        %v377 = vlaneseq
        %v378 = vshrl.u32 %v377, 7
        %v379 = vsub.s32 0, %v378
        %v380 = vrot.slane %v352, %v379
        %v381 = vmul.f32 %v286, %v376
        %v382 = vmul.f32 %v287, %v380
        %v383 = vsel %vm300, %v381, 0.0
        %384 = vadd.xlane.f32.xlu0 %v383
        %v385 = vpop.xlane.xlu0 %384
        %v386 = vsel %vm300, %v382, 0.0
        %387 = vadd.xlane.f32.xlu0 %v386
        %v388 = vpop.xlane.xlu0 %387
        %v391 = vlaneseq
        %v392 = vand.u32 %v391, 127
        %v393 = vlaneseq
        %v394 = vshrl.u32 %v393, 7
        %v395 = vsub.s32 %v392, %v394
        %v396 = vrot.slane %v385, %v395
        %v397 = vlaneseq
        %v398 = vshrl.u32 %v397, 7
        %v399 = vsub.s32 %v392, %v398
        %v400 = vrot.slane %v388, %v399
        %v401 = vsel %vm329, %v400, %v396
        %v403 = vadd.f32 %v372, %v401
        %vm404 = vcmask 25600
        %405 = vst.msk [vmem:[#allocation4] sm:$0x3] %vm404, %v403
        %406 = vst.msk [vmem:[#allocation2] sm:$0x3] %vm364, %v336
        %p407 = scmp.eq.s32.totalorder %s31, 1
        // Predicated region
        $region45: #{tpu_custom_call.1} parent=31 // pred_check
          %p408 = pneg %p407
        $region46: #{tpu_custom_call.1} parent=31 // pred_check_branch
          %410 = sbr.rel (%p408) target = $region48
        $region47: #{tpu_custom_call.1} parent=31 // pred_region
          %v411 = vld [vmem:[#allocation3] sm:$0x3]
          %v412 = vrcp.pop %v411
          %v413 = vmul.f32 %v411, %v412
          %v414 = vsub.f32 2.0, %v413
          %v415 = vmul.f32 %v412, %v414
          %v416 = vld [vmem:[#allocation4] sm:$0x3]
          %418 = vset.pattern.permute.xlu0 0
          %419 = vperm.xlu0 %418, %v415
          %v420 = vpop.permute.xlu0 %419
          %v422 = vmul.f32 %v416, %v420
          %v425 = vunpack.c.l.s4 1966171168
          %v426 = vunpack.c.0.s8 %v425
          %v427 = vlaneseq
          %v428 = vshrl.u32 %v427, 7
          %v429 = vsub.s32 %v426, %v428
          %v430 = vrot.slane %v422, %v429
          %v431 = vcombine.high %v430, %v430
          %v433 = vunpack.c.l.s4 1966171168
          %v434 = vunpack.c.0.s8 %v433
          %v435 = vlaneseq
          %v436 = vshrl.u32 %v435, 7
          %v437 = vsub.s32 %v434, %v436
          %v438 = vrot.slane %v430, %v437
          %v440 = vunpack.c.l.s4 1966171168
          %v441 = vunpack.c.0.s8 %v440
          %v442 = vlaneseq
          %v443 = vshrl.u32 %v442, 7
          %v444 = vsub.s32 %v441, %v443
          %v445 = vrot.slane %v431, %v444
          %vm448 = vcmask 24576
          %449 = vst.msk [vmem:[#allocation11] sm:$0x1] %vm448, %v438
          %450 = vst.msk [vmem:[#allocation11 + $0x1] sm:$0x1] %vm448, %v445
        $region48: #{tpu_custom_call.1} parent=31 // pred_fallthru
          _
        %s451 = sand.u32 %s125, 1
        %s452 = scalar_lea.sflag [#allocation7], %s451
        %s453 = sand.u32 %s125, 1
        %s454 = smul.addr %s453, 2
        %s455 = scalar_lea.vmem [#allocation10], %s454
        // Predicated region
        $region49: #{tpu_custom_call.1} parent=31 // pred_check
          %p456 = pneg %p135
        $region50: #{tpu_custom_call.1} parent=31 // pred_check_branch
          %458 = sbr.rel (%p456) target = $region52
        $region51: #{tpu_custom_call.1} parent=31 // pred_region
          %s459 = smul.u32 2, %s30
          %s461 = ssub.s32 32, 32
          %462 = vsyncadd %s452, %s461
          %s463 = smul.addr %s459, 2
          %s464 = sadd.s32 %s31, %s463
          %s465 = smul.addr %s464, 16
          %s466 = scalar_lea.hbm %s3, %s465
          %s467 = sshll.u32 %s455, 4
          %s468 = int_to_ptr.vmem [resolvable:$true] %s467
          %473 = dma.vmem_to_hbm [thread:$0]  %s468, 32, %s466, %s452, 16, 32, 1
        $region52: #{tpu_custom_call.1} parent=31 // pred_fallthru
          _
        // Predicated region
        $region53: #{tpu_custom_call.1} parent=31 // pred_check
          %p474 = pneg %p161
        $region54: #{tpu_custom_call.1} parent=31 // pred_check_branch
          %476 = sbr.rel (%p474) target = $region56
        $region55: #{tpu_custom_call.1} parent=31 // pred_region
          %s477 = smul.u32 2, %s30
          %s479 = ssub.s32 32, 32
          %480 = vsyncadd [#allocation12], %s479
          %s481 = smul.addr %s477, 16
          %s482 = scalar_lea.hbm %s4, %s481
          %s483 = sshll.u32 [#allocation11], 4
          %s484 = int_to_ptr.vmem [resolvable:$true] %s483
          %489 = dma.vmem_to_hbm [thread:$0]  %s484, 32, %s482, [#allocation12], 16, 16, 1
        $region56: #{tpu_custom_call.1} parent=31 // pred_fallthru
          _
        // Predicated region
        $region57: #{tpu_custom_call.1} parent=31 // pred_check
          %p490 = pneg %p161
        $region58: #{tpu_custom_call.1} parent=31 // pred_check_branch
          %492 = sbr.rel (%p490) target = $region60
        $region59: #{tpu_custom_call.1} parent=31 // pred_region
          %493 = dma.done [#allocation12], 32
        $region60: #{tpu_custom_call.1} parent=31 // pred_fallthru
          _
      $region32: #{tpu_custom_call.1} parent=5 // pred_fallthru
        _
      %p494 = scmp.le.s32.totalorder 2, %s21
      // Predicated region
      $region61: #{tpu_custom_call.1} parent=5 // pred_check
        %p495 = pneg %p494
      $region62: #{tpu_custom_call.1} parent=5 // pred_check_branch
        %497 = sbr.rel (%p495) target = $region64
      $region63: #{tpu_custom_call.1} parent=5 // pred_region
        %s498 = ssub.s32 %s21, 2
        // Predicated region
        $region65: #{tpu_custom_call.1} parent=63 // pred_check
          %p499 = pneg %p141
        $region66: #{tpu_custom_call.1} parent=63 // pred_check_branch
          %501 = sbr.rel (%p499) target = $region68
        $region67: #{tpu_custom_call.1} parent=63 // pred_region
          %s502 = sand.u32 %s126, 1
          %s503 = scalar_lea.sflag [#allocation7], %s502
          %s504 = sand.u32 %s126, 1
          %s505 = smul.addr %s504, 2
          %s506 = scalar_lea.vmem [#allocation10], %s505
          %507 = dma.done %s503, 32
        $region68: #{tpu_custom_call.1} parent=63 // pred_fallthru
          _
      $region64: #{tpu_custom_call.1} parent=5 // pred_fallthru
        _
    $region6: #{tpu_custom_call.1} parent=1 // loop_footer
      %s25 = sadd.s32 1, %s21
    $region7: #{tpu_custom_call.1} parent=1 // loop_footer_branch
      %20 = sbr.rel target = $region3
    $region8: #{tpu_custom_call.1} parent=1 // loop_exit
      _
    %508 = vsyncpa [#allocation6], 1
    %s509 = scalar_lea.sflag [#allocation6], 1
    %510 = vsyncpa %s509, 1
    %511 = vsyncpa [#allocation9], 1
    %s512 = scalar_lea.sflag [#allocation9], 1
    %513 = vsyncpa %s512, 1
    %514 = vsyncpa [#allocation7], 1
    %s515 = scalar_lea.sflag [#allocation7], 1
    %516 = vsyncpa %s515, 1
    %517 = vsyncpa [#allocation12], 1

</llo_original>
